<compile_context>
chip_gen: v7x
topology: tpu7x:2x2x1
jax: 0.10.0
libtpu: 0.0.40
codegen_flags: <defaults>
</compile_context>

<pallas_src>
import functools

import jax
import jax.numpy as jnp
from jax.experimental import pallas as pl
from jax.experimental.pallas import tpu as pltpu


# ----------------------------------------------------------------------------
# Kernel 1: fused (backbone 1x1 conv + ReLU) -> (add_on 1x1 conv), NCHW-native.
#   x block:  (1, Cin, T)   pixels on lanes
#   weights:  w1t (F, Cin), w2t (D, F)   (pre-transposed, channels-out on rows)
#   biases:   (F, 1), (D, 1)             (broadcast along the pixel/lane dim)
#   output:   (1, D, T)                  lane-dense stores (T is a multiple of
#                                         128 or the full H*W)
# ----------------------------------------------------------------------------
def _fused_backbone_addon_kernel(x_ref, w1_ref, b1_ref, w2_ref, b2_ref, o_ref):
    x = x_ref[0]                                                        # (Cin, T)
    h = jnp.dot(w1_ref[...], x, preferred_element_type=jnp.float32) + b1_ref[...]
    h = jnp.maximum(h, 0.0)                       # backbone ReLU, stays in VMEM
    p = jnp.dot(w2_ref[...], h, preferred_element_type=jnp.float32) + b2_ref[...]
    o_ref[0] = p.astype(o_ref.dtype)


def _pick_hw_tile(hw, cap=2048):
    """Largest tile along the pixel axis: whole extent when small, else a
    128-multiple divisor (memory-bound => bigger tiles approach HBM roofline)."""
    if hw <= cap:
        return hw
    for t in (2048, 1024, 512, 256, 128):
        if hw % t == 0:
            return t
    return hw


def fused_backbone_addon(x_nchw, w1t, b1, w2t, b2):
    B, Cin, H, W = x_nchw.shape
    HW = H * W
    F = w1t.shape[0]
    D = w2t.shape[0]
    t = _pick_hw_tile(HW)
    x3 = x_nchw.reshape(B, Cin, HW)               # contiguous (free) reshape
    out = pl.pallas_call(
        _fused_backbone_addon_kernel,
        out_shape=jax.ShapeDtypeStruct((B, D, HW), jnp.float32),
        grid=(B, HW // t),
        in_specs=[
            pl.BlockSpec((1, Cin, t), lambda b, i: (b, 0, i)),
            pl.BlockSpec((F, Cin), lambda b, i: (0, 0)),
            pl.BlockSpec((F, 1), lambda b, i: (0, 0)),
            pl.BlockSpec((D, F), lambda b, i: (0, 0)),
            pl.BlockSpec((D, 1), lambda b, i: (0, 0)),
        ],
        out_specs=pl.BlockSpec((1, D, t), lambda b, i: (b, 0, i)),
        compiler_params=pltpu.CompilerParams(
            dimension_semantics=("parallel", "parallel")),
    )(x3, w1t, b1, w2t, b2)
    return out.reshape(B, D, H, W)                # NCHW, matching the PyTorch module


# ----------------------------------------------------------------------------
# Kernel 2: fused PIPNet head (whole batch in one grid step).
# ----------------------------------------------------------------------------
def _upsample_matrix(h_ds, w_ds, dtype=jnp.float32):
    """One-hot (HWds, HW) matrix U with U[q, p] = 1 iff low-res pixel q is the
    2x nearest-neighbour source of full-res pixel p (== repeat_interleave(2))."""
    H, W = 2 * h_ds, 2 * w_ds
    p = jnp.arange(H * W, dtype=jnp.int32)
    q_of_p = (p // W // 2) * w_ds + (p % W) // 2
    q = jnp.arange(h_ds * w_ds, dtype=jnp.int32)
    return (q[:, None] == q_of_p[None, :]).astype(dtype)


def _head_kernel(pf_ref, pfds_ref, u_ref, w_ref, b_ref, pooled_ref, out_ref, *,
                 clamp: bool):
    pf = pf_ref[...]                              # (B, D, HW)   full-res protos
    pfds = pfds_ref[...]                          # (B, D, HWds) low-res protos
    bsz, _, hw = pf.shape
    hw_ds = pfds.shape[2]

    # 2x nearest-neighbour upsample in VMEM via a one-hot selection matmul on
    # the MXU; the upsampled map never round-trips through HBM.
    u = jnp.broadcast_to(u_ref[...], (bsz, hw_ds, hw))
    pfds_up = jnp.einsum("bdq,bqp->bdp", pfds, u,
                         preferred_element_type=jnp.float32)   # (B, D, HW)

    # Channel softmax over concat([pf, pfds_up], channel) computed on the two
    # halves sharing one joint max and one denominator (no 2D-wide concat).
    m = jnp.maximum(jnp.max(pf, axis=1, keepdims=True),
                    jnp.max(pfds_up, axis=1, keepdims=True))   # (B, 1, HW)
    e1 = jnp.exp(pf - m)
    e2 = jnp.exp(pfds_up - m)
    denom = jnp.sum(e1, axis=1, keepdims=True) + jnp.sum(e2, axis=1, keepdims=True)
    # Exact divide to keep the 1e-5 reference tolerance;
    # pl.reciprocal(denom, approx=True) would move this onto the idle EUP slot.
    inv = 1.0 / denom

    # Global spatial max pool == AdaptiveMaxPool2d((1,1)) + Flatten, whole batch.
    pooled = jnp.concatenate(
        [jnp.max(e1 * inv, axis=2), jnp.max(e2 * inv, axis=2)], axis=1)  # (B, 2D)
    if clamp:
        pooled = jnp.where(pooled < 0.1, 0.0, pooled)
    pooled_ref[...] = pooled.astype(pooled_ref.dtype)

    # NonNegLinear classification: relu(W) matmul + bias.  Single grid step =>
    # relu(W) is computed exactly once per call.
    w_nonneg = jnp.maximum(w_ref[...], 0.0)
    out = jnp.dot(pooled, w_nonneg, preferred_element_type=jnp.float32) + b_ref[...]
    out_ref[...] = out.astype(out_ref.dtype)


def pipnet_head(proto_nchw, proto_ds_nchw, cls_w, cls_b, *, inference):
    B, D, H, W = proto_nchw.shape
    _, _, Hds, Wds = proto_ds_nchw.shape
    HW, HWds = H * W, Hds * Wds
    C = cls_w.shape[1]
    pf = proto_nchw.reshape(B, D, HW)             # free contiguous reshapes
    pfds = proto_ds_nchw.reshape(B, D, HWds)
    u = _upsample_matrix(Hds, Wds)

    pooled, out = pl.pallas_call(
        functools.partial(_head_kernel, clamp=inference),
        out_shape=(
            jax.ShapeDtypeStruct((B, 2 * D), jnp.float32),
            jax.ShapeDtypeStruct((B, C), jnp.float32),
        ),
        grid=(1,),
        in_specs=[
            pl.BlockSpec((B, D, HW), lambda i: (0, 0, 0)),
            pl.BlockSpec((B, D, HWds), lambda i: (0, 0, 0)),
            pl.BlockSpec((HWds, HW), lambda i: (0, 0)),
            pl.BlockSpec((2 * D, C), lambda i: (0, 0)),
            pl.BlockSpec((1, C), lambda i: (0, 0)),
        ],
        out_specs=(
            pl.BlockSpec((B, 2 * D), lambda i: (0, 0)),
            pl.BlockSpec((B, C), lambda i: (0, 0)),
        ),
        compiler_params=pltpu.CompilerParams(dimension_semantics=("arbitrary",)),
    )(pf, pfds, u, cls_w, cls_b.reshape(1, C))
    return pooled, out


# ----------------------------------------------------------------------------
# PIPNet wrapper (parameter setup + glue; NCHW end-to-end, no transposes)
# ----------------------------------------------------------------------------
class PIPNetPallas:
    def __init__(self, key, *, num_classes=10, num_features=64,
                 in_channels=3, feat_channels=32):
        D = num_features                      # add_on output channels; num_prototypes = 2*D
        k0, k1, k2 = jax.random.split(key, 3)
        s = 0.1
        self.net_w = (jax.random.normal(k0, (in_channels, feat_channels)) * s).astype(jnp.float32)
        self.net_b = jnp.zeros((feat_channels,), jnp.float32)
        self.addon_w = (jax.random.normal(k1, (feat_channels, D)) * s).astype(jnp.float32)
        self.addon_b = jnp.zeros((D,), jnp.float32)
        # NonNegLinear classification: weight (num_prototypes, num_classes), bias
        self.cls_w = jnp.abs(jax.random.normal(k2, (2 * D, num_classes)) * s).astype(jnp.float32)
        self.cls_b = jnp.zeros((num_classes,), jnp.float32)
        self.normalization_multiplier = jnp.float32(2.0)  # parity with PyTorch, unused in fwd
        self._num_classes = num_classes
        self._num_prototypes = 2 * D
        self._num_features = num_features

    def __call__(self, xs_nchw, xs_ds_nchw, inference=False):
        xs = xs_nchw.astype(jnp.float32)
        xs_ds = xs_ds_nchw.astype(jnp.float32)
        # weights pre-transposed for the pixels-on-lanes kernels (tiny, one-off)
        w1t = self.net_w.T                     # (F, Cin)
        w2t = self.addon_w.T                   # (D, F)
        b1 = self.net_b.reshape(-1, 1)         # (F, 1)
        b2 = self.addon_b.reshape(-1, 1)       # (D, 1)

        # _net + _add_on fused (intermediate features never hit HBM)
        proto = fused_backbone_addon(xs, w1t, b1, w2t, b2)        # (B, D, H, W)
        proto_ds = fused_backbone_addon(xs_ds, w1t, b1, w2t, b2)  # (B, D, H/2, W/2)

        # combine + softmax + pool + (clamp) + NonNegLinear, fused
        pooled, out = pipnet_head(proto, proto_ds, self.cls_w, self.cls_b,
                                  inference=inference)
        return proto, proto_ds, pooled, out


# ----------------------------------------------------------------------------
# Pure-JAX reference (for correctness check only)
# ----------------------------------------------------------------------------
def pipnet_reference(model, xs_nchw, xs_ds_nchw, inference=False):
    def conv1x1_ref(x, w, b, relu):
        y = jnp.einsum("bchw,cf->bfhw", x, w) + b[None, :, None, None]
        return jnp.maximum(y, 0.0) if relu else y

    f = conv1x1_ref(xs_nchw.astype(jnp.float32), model.net_w, model.net_b, True)
    f_ds = conv1x1_ref(xs_ds_nchw.astype(jnp.float32), model.net_w, model.net_b, True)
    p = conv1x1_ref(f, model.addon_w, model.addon_b, False)        # (B, D, H, W)
    p_ds = conv1x1_ref(f_ds, model.addon_w, model.addon_b, False)  # (B, D, H/2, W/2)
    p_ds_ups = jnp.repeat(jnp.repeat(p_ds, 2, axis=2), 2, axis=3)
    combined = jnp.concatenate([p, p_ds_ups], axis=1)              # (B, 2D, H, W)
    sm = jax.nn.softmax(combined, axis=1)
    pooled = jnp.max(sm, axis=(2, 3))
    if inference:
        pooled = jnp.where(pooled < 0.1, 0.0, pooled)
    out = pooled @ jnp.maximum(model.cls_w, 0.0) + model.cls_b
    return p, p_ds, pooled, out


if __name__ == "__main__":
    key = jax.random.PRNGKey(0)
    kx, kxd, kp = jax.random.split(key, 3)

    B, C, H, W = 2, 3, 16, 16
    xs = jax.random.normal(kx, (B, C, H, W), dtype=jnp.float32)
    xs_ds = jax.random.normal(kxd, (B, C, H // 2, W // 2), dtype=jnp.float32)

    model = PIPNetPallas(kp, num_classes=10, num_features=64,
                         in_channels=C, feat_channels=32)

    proto, proto_ds, pooled, out = model(xs, xs_ds, inference=False)
    jax.block_until_ready((proto, proto_ds, pooled, out))

    # inference path (clamped pooled activations)
    _, _, clamped_pooled, out_inf = model(xs, xs_ds, inference=True)
    jax.block_until_ready((clamped_pooled, out_inf))

    # correctness vs pure-JAX reference
    rp, rpds, rpool, rout = pipnet_reference(model, xs, xs_ds, inference=False)
    assert jnp.allclose(proto, rp, atol=1e-5, rtol=1e-5)
    assert jnp.allclose(proto_ds, rpds, atol=1e-5, rtol=1e-5)
    # pooled/out go through an extra MXU matmul (in-VMEM upsample); allow a bit
    # of headroom for MXU f32 pass differences between Mosaic and XLA.
    assert jnp.allclose(pooled, rpool, atol=1e-4, rtol=1e-4)
    assert jnp.allclose(out, rout, atol=1e-4, rtol=1e-4)

    _, _, rpool_i, rout_i = pipnet_reference(model, xs, xs_ds, inference=True)
    assert jnp.allclose(clamped_pooled, rpool_i, atol=1e-4, rtol=1e-4)
    assert jnp.allclose(out_inf, rout_i, atol=1e-4, rtol=1e-4)

    print("KERNEL_OK")
</pallas_src>

<mosaic_0001>
module attributes {stable_mosaic.version = 11 : i64} {
  func.func @_fused_backbone_addon_kernel(%arg0: i32, %arg1: i32, %arg2: memref<1x3x256xf32, #tpu.memory_space<vmem>>, %arg3: memref<32x3xf32, #tpu.memory_space<vmem>>, %arg4: memref<32x1xf32, #tpu.memory_space<vmem>>, %arg5: memref<64x32xf32, #tpu.memory_space<vmem>>, %arg6: memref<64x1xf32, #tpu.memory_space<vmem>>, %arg7: memref<1x64x256xf32, #tpu.memory_space<vmem>>) attributes {dimension_semantics = [#tpu.dimension_semantics<parallel>, #tpu.dimension_semantics<parallel>], iteration_bounds = array<i64: 2, 1>, scalar_prefetch = 0 : i64, scratch_operands = 0 : i64, tpu.core_type = #tpu.core_type<tc>, window_params = [{transform_indices = @transform_0, window_bounds = array<i64: 1, 3, 256>}, {pipeline_mode = #tpu.pipeline_mode<synchronous>, transform_indices = @transform_1, window_bounds = array<i64: 32, 3>}, {pipeline_mode = #tpu.pipeline_mode<synchronous>, transform_indices = @transform_2, window_bounds = array<i64: 32, 1>}, {pipeline_mode = #tpu.pipeline_mode<synchronous>, transform_indices = @transform_3, window_bounds = array<i64: 64, 32>}, {pipeline_mode = #tpu.pipeline_mode<synchronous>, transform_indices = @transform_4, window_bounds = array<i64: 64, 1>}, {transform_indices = @transform_5, window_bounds = array<i64: 1, 64, 256>}]} {
    %c0 = arith.constant 0 : index
    %c0_0 = arith.constant 0 : index
    %c0_1 = arith.constant 0 : index
    %0 = vector.load %arg2[%c0, %c0_0, %c0_1] : memref<1x3x256xf32, #tpu.memory_space<vmem>>, vector<1x3x256xf32>
    %1 = vector.shape_cast %0 : vector<1x3x256xf32> to vector<3x256xf32>
    %c0_2 = arith.constant 0 : index
    %c0_3 = arith.constant 0 : index
    %2 = vector.load %arg3[%c0_2, %c0_3] : memref<32x3xf32, #tpu.memory_space<vmem>>, vector<32x3xf32>
    %cst = arith.constant dense<0.000000e+00> : vector<32x256xf32>
    %3 = tpu.matmul %2, %1, %cst {dimension_numbers = #tpu.dot_dimension_numbers<[1], [0], [0], [1], [0, 0, 1, 1], [], []>} : vector<32x3xf32>, vector<3x256xf32>, vector<32x256xf32> -> vector<32x256xf32>
    %c0_4 = arith.constant 0 : index
    %c0_5 = arith.constant 0 : index
    %4 = vector.load %arg4[%c0_4, %c0_5] : memref<32x1xf32, #tpu.memory_space<vmem>>, vector<32x1xf32>
    %5 = vector.broadcast %4 : vector<32x1xf32> to vector<32x256xf32>
    %6 = arith.addf %3, %5 : vector<32x256xf32>
    %cst_6 = arith.constant 0.000000e+00 : f32
    %7 = vector.broadcast %cst_6 : f32 to vector<32x256xf32>
    %8 = arith.maximumf %6, %7 : vector<32x256xf32>
    %c0_7 = arith.constant 0 : index
    %c0_8 = arith.constant 0 : index
    %9 = vector.load %arg5[%c0_7, %c0_8] : memref<64x32xf32, #tpu.memory_space<vmem>>, vector<64x32xf32>
    %cst_9 = arith.constant dense<0.000000e+00> : vector<64x256xf32>
    %10 = tpu.matmul %9, %8, %cst_9 {dimension_numbers = #tpu.dot_dimension_numbers<[1], [0], [0], [1], [0, 0, 1, 1], [], []>} : vector<64x32xf32>, vector<32x256xf32>, vector<64x256xf32> -> vector<64x256xf32>
    %c0_10 = arith.constant 0 : index
    %c0_11 = arith.constant 0 : index
    %11 = vector.load %arg6[%c0_10, %c0_11] : memref<64x1xf32, #tpu.memory_space<vmem>>, vector<64x1xf32>
    %12 = vector.broadcast %11 : vector<64x1xf32> to vector<64x256xf32>
    %13 = arith.addf %10, %12 : vector<64x256xf32>
    %c0_12 = arith.constant 0 : index
    %c0_13 = arith.constant 0 : index
    %c0_14 = arith.constant 0 : index
    %14 = vector.load %arg7[%c0_12, %c0_13, %c0_14] : memref<1x64x256xf32, #tpu.memory_space<vmem>>, vector<1x64x256xf32>
    %15 = vector.shape_cast %14 : vector<1x64x256xf32> to vector<64x256xf32>
    %16 = vector.shape_cast %13 : vector<64x256xf32> to vector<1x64x256xf32>
    tpu.vector_store %arg7[%c0_12, %c0_13, %c0_14], %16 {strides = array<i32>} : memref<1x64x256xf32, #tpu.memory_space<vmem>>, vector<1x64x256xf32>,
    return
  }
  func.func @transform_0(%arg0: i32, %arg1: i32) -> (i32, i32, i32) {
    %c0_i32 = arith.constant 0 : i32
    %c0_i32_0 = arith.constant 0 : i32
    return %arg0, %c0_i32, %arg1 : i32, i32, i32
  }
  func.func @transform_1(%arg0: i32, %arg1: i32) -> (i32, i32) {
    %c0_i32 = arith.constant 0 : i32
    %c0_i32_0 = arith.constant 0 : i32
    %c0_i32_1 = arith.constant 0 : i32
    return %c0_i32, %c0_i32_0 : i32, i32
  }
  func.func @transform_2(%arg0: i32, %arg1: i32) -> (i32, i32) {
    %c0_i32 = arith.constant 0 : i32
    %c0_i32_0 = arith.constant 0 : i32
    %c0_i32_1 = arith.constant 0 : i32
    return %c0_i32, %c0_i32_0 : i32, i32
  }
  func.func @transform_3(%arg0: i32, %arg1: i32) -> (i32, i32) {
    %c0_i32 = arith.constant 0 : i32
    %c0_i32_0 = arith.constant 0 : i32
    %c0_i32_1 = arith.constant 0 : i32
    return %c0_i32, %c0_i32_0 : i32, i32
  }
  func.func @transform_4(%arg0: i32, %arg1: i32) -> (i32, i32) {
    %c0_i32 = arith.constant 0 : i32
    %c0_i32_0 = arith.constant 0 : i32
    %c0_i32_1 = arith.constant 0 : i32
    return %c0_i32, %c0_i32_0 : i32, i32
  }
  func.func @transform_5(%arg0: i32, %arg1: i32) -> (i32, i32, i32) {
    %c0_i32 = arith.constant 0 : i32
    %c0_i32_0 = arith.constant 0 : i32
    return %arg0, %c0_i32, %arg1 : i32, i32, i32
  }
}

</mosaic_0001>

<llo_original>
// kernel: tpu_custom_call.1
$region0: #{tpu_custom_call.1}
  #allocation0 [shape = 'u32[]', space=smem, size = 0x4, offset = 0x4, fixed_abs, tag = 'smem constant byte address 0x4 - core index']
  #allocation1 [shape = 'u32[144,128]{1,0:T(1,128)}', space=vmem, size = 0x12000, scoped, tag = 'internal scratch']
  %s0 = inlined_call_operand.vmem [shape: f32[2,3,256], index: 0, kind: input, shape index: {}]
  %s1 = inlined_call_operand.vmem [shape: f32[32,3], index: 1, kind: input, shape index: {}]
  %s2 = inlined_call_operand.vmem [shape: f32[32,1], index: 2, kind: input, shape index: {}]
  %s3 = inlined_call_operand.vmem [shape: f32[64,32], index: 3, kind: input, shape index: {}]
  %s4 = inlined_call_operand.vmem [shape: f32[64,1], index: 4, kind: input, shape index: {}]
  %s5 = inlined_call_operand.hbm [shape: f32[2,64,256], index: 5, kind: output, shape index: {}]
  %s6 = sld [smem:[#allocation0]]
  $region53: #{tpu_custom_call.1} parent=0
    _
  %s8 = ssub.s32 1, %s6
  %s9 = scalar_select 0, %s8, %s6
  $region1: #{tpu_custom_call.1} parent=0
    #allocation2 [shape = 'u8[131072]{0}', space=vmem, size = 0x20000, scoped, tag = 'output window, operand 0']
    #allocation3 [shape = 's32[2]{0}', space=sflag, size = 0x8, scoped, tag = 'scoped memory for tpu_custom_call.1']
    %10 = vsyncpa [#allocation3], 0
    %s11 = scalar_lea.sflag [#allocation3], 1
    %12 = vsyncpa %s11, 0
    loop: start=0, step=1, limit=4
    $region2: #{tpu_custom_call.1} parent=1 // loop_pre_header
      _
    $region3: #{tpu_custom_call.1} parent=1 // loop_header
      %s14 = sphi 0, %s18
      %p15 = scmp.ge.s32.totalorder %s14, 4
      %s21 = sphi 0, %s33
      %s22 = sphi 0, %s29
      %s23 = sphi 0, %s21
      %s24 = sphi 0, %s22
      %s25 = sphi 0, %s23
      %s26 = sphi 0, %s24
      %s38 = sphi 0, %s40
      %s41 = sphi 0, %s38
      %s42 = sphi 0, %s41
      %s58 = sphi 0, %s42
      %s62 = sphi 0, %s62
      %s64 = sphi 0, %s62
      %s65 = sphi 0, %s64
      %s79 = sphi 0, %s65
      %s83 = sphi 0, %s83
      %s85 = sphi 0, %s83
      %s86 = sphi 0, %s85
      %s100 = sphi 0, %s86
      %s104 = sphi 0, %s104
      %s106 = sphi 0, %s104
      %s107 = sphi 0, %s106
      %s121 = sphi 0, %s107
      %s125 = sphi 0, %s125
      %s127 = sphi 0, %s125
      %s128 = sphi 0, %s127
      %s142 = sphi 0, %s128
      %s150 = sphi 0, %s152
      %s153 = sphi 0, %s150
      %s154 = sphi 0, %s153
      %s170 = sphi 0, %s154
    $region4: #{tpu_custom_call.1} parent=1 // loop_header_branch
      %17 = sbr.rel (%p15) target = $region8
    $region5: #{tpu_custom_call.1} parent=1 // loop_body
      %s19 = ssub.s32 %s14, 1
      %s20 = ssub.s32 %s14, 2
      %s27 = sadd.s32 1, %s22
      %p28 = scmp.ge.s32.totalorder %s27, 1
      %s29 = scalar_select %p28, 0, %s27
      %s30 = sadd.s32 1, %s21
      %s31 = scalar_select %p28, %s30, %s21
      %p32 = scmp.ge.s32.totalorder %s31, 2
      %s33 = scalar_select %p32, 0, %s31
      %s34 = ssub.s32 %s21, %s33
      %s35 = ssub.s32 %s22, %s29
      %s36 = sor.u32 %s34, %s35
      %p37 = scmp.eq.s32.totalorder %s36, 0
      %s39 = sadd.s32 %s38, 1
      %s40 = scalar_select %p37, %s38, %s39
      %p43 = pneg %p37
      %p44 = scmp.eq.s32.totalorder %s14, 1
      %p45 = por %p43, %p44
      %p46 = scmp.ne.s32.totalorder %s38, %s41
      %p47 = scmp.eq.s32.totalorder %s14, 0
      %p48 = por %p46, %p47
      %p49 = scmp.ne.s32.totalorder %s38, %s41
      %p50 = scmp.eq.s32.totalorder %s19, 1
      %p51 = por %p49, %p50
      %p52 = scmp.ne.s32.totalorder %s41, %s42
      %p53 = scmp.eq.s32.totalorder %s19, 0
      %p54 = por %p52, %p53
      %p55 = scmp.ne.s32.totalorder %s41, %s42
      %p56 = scmp.eq.s32.totalorder %s20, 1
      %p57 = por %p55, %p56
      %p59 = scmp.ne.s32.totalorder %s42, %s58
      %p60 = scmp.eq.s32.totalorder %s20, 0
      %p61 = por %p59, %p60
      %s63 = sadd.s32 %s62, 1
      %p66 = scmp.eq.s32.totalorder %s14, 1
      %p67 = scmp.ne.s32.totalorder %s62, %s64
      %p68 = scmp.eq.s32.totalorder %s14, 0
      %p69 = por %p67, %p68
      %p70 = scmp.ne.s32.totalorder %s62, %s64
      %p71 = scmp.eq.s32.totalorder %s19, 1
      %p72 = por %p70, %p71
      %p73 = scmp.ne.s32.totalorder %s64, %s65
      %p74 = scmp.eq.s32.totalorder %s19, 0
      %p75 = por %p73, %p74
      %p76 = scmp.ne.s32.totalorder %s64, %s65
      %p77 = scmp.eq.s32.totalorder %s20, 1
      %p78 = por %p76, %p77
      %p80 = scmp.ne.s32.totalorder %s65, %s79
      %p81 = scmp.eq.s32.totalorder %s20, 0
      %p82 = por %p80, %p81
      %s84 = sadd.s32 %s83, 1
      %p87 = scmp.eq.s32.totalorder %s14, 1
      %p88 = scmp.ne.s32.totalorder %s83, %s85
      %p89 = scmp.eq.s32.totalorder %s14, 0
      %p90 = por %p88, %p89
      %p91 = scmp.ne.s32.totalorder %s83, %s85
      %p92 = scmp.eq.s32.totalorder %s19, 1
      %p93 = por %p91, %p92
      %p94 = scmp.ne.s32.totalorder %s85, %s86
      %p95 = scmp.eq.s32.totalorder %s19, 0
      %p96 = por %p94, %p95
      %p97 = scmp.ne.s32.totalorder %s85, %s86
      %p98 = scmp.eq.s32.totalorder %s20, 1
      %p99 = por %p97, %p98
      %p101 = scmp.ne.s32.totalorder %s86, %s100
      %p102 = scmp.eq.s32.totalorder %s20, 0
      %p103 = por %p101, %p102
      %s105 = sadd.s32 %s104, 1
      %p108 = scmp.eq.s32.totalorder %s14, 1
      %p109 = scmp.ne.s32.totalorder %s104, %s106
      %p110 = scmp.eq.s32.totalorder %s14, 0
      %p111 = por %p109, %p110
      %p112 = scmp.ne.s32.totalorder %s104, %s106
      %p113 = scmp.eq.s32.totalorder %s19, 1
      %p114 = por %p112, %p113
      %p115 = scmp.ne.s32.totalorder %s106, %s107
      %p116 = scmp.eq.s32.totalorder %s19, 0
      %p117 = por %p115, %p116
      %p118 = scmp.ne.s32.totalorder %s106, %s107
      %p119 = scmp.eq.s32.totalorder %s20, 1
      %p120 = por %p118, %p119
      %p122 = scmp.ne.s32.totalorder %s107, %s121
      %p123 = scmp.eq.s32.totalorder %s20, 0
      %p124 = por %p122, %p123
      %s126 = sadd.s32 %s125, 1
      %p129 = scmp.eq.s32.totalorder %s14, 1
      %p130 = scmp.ne.s32.totalorder %s125, %s127
      %p131 = scmp.eq.s32.totalorder %s14, 0
      %p132 = por %p130, %p131
      %p133 = scmp.ne.s32.totalorder %s125, %s127
      %p134 = scmp.eq.s32.totalorder %s19, 1
      %p135 = por %p133, %p134
      %p136 = scmp.ne.s32.totalorder %s127, %s128
      %p137 = scmp.eq.s32.totalorder %s19, 0
      %p138 = por %p136, %p137
      %p139 = scmp.ne.s32.totalorder %s127, %s128
      %p140 = scmp.eq.s32.totalorder %s20, 1
      %p141 = por %p139, %p140
      %p143 = scmp.ne.s32.totalorder %s128, %s142
      %p144 = scmp.eq.s32.totalorder %s20, 0
      %p145 = por %p143, %p144
      %s146 = ssub.s32 %s21, %s33
      %s147 = ssub.s32 %s22, %s29
      %s148 = sor.u32 %s146, %s147
      %p149 = scmp.eq.s32.totalorder %s148, 0
      %s151 = sadd.s32 %s150, 1
      %s152 = scalar_select %p149, %s150, %s151
      %p155 = pneg %p149
      %p156 = scmp.eq.s32.totalorder %s14, 1
      %p157 = por %p155, %p156
      %p158 = scmp.ne.s32.totalorder %s150, %s153
      %p159 = scmp.eq.s32.totalorder %s14, 0
      %p160 = por %p158, %p159
      %p161 = scmp.ne.s32.totalorder %s150, %s153
      %p162 = scmp.eq.s32.totalorder %s19, 1
      %p163 = por %p161, %p162
      %p164 = scmp.ne.s32.totalorder %s153, %s154
      %p165 = scmp.eq.s32.totalorder %s19, 0
      %p166 = por %p164, %p165
      %p167 = scmp.ne.s32.totalorder %s153, %s154
      %p168 = scmp.eq.s32.totalorder %s20, 1
      %p169 = por %p167, %p168
      %p171 = scmp.ne.s32.totalorder %s154, %s170
      %p172 = scmp.eq.s32.totalorder %s20, 0
      %p173 = por %p171, %p172
      %p174 = scmp.le.s32.totalorder 1, %s14
      %p175 = scmp.lt.s32.totalorder %s14, 3
      %p176 = pnand %p174, %p175
      %p177 = pneg %p176
      // Predicated region
      $region9: #{tpu_custom_call.1} parent=5 // pred_check
        _
      $region10: #{tpu_custom_call.1} parent=5 // pred_check_branch
        %179 = sbr.rel (%p176) target = $region12
      $region11: #{tpu_custom_call.1} parent=5 // pred_region
        %s180 = ssub.s32 %s14, 1
        // Predicated region
        $region13: #{tpu_custom_call.1} parent=11 // pred_check
          %p181 = pneg %p75
        $region14: #{tpu_custom_call.1} parent=11 // pred_check_branch
          %183 = sbr.rel (%p181) target = $region16
        $region15: #{tpu_custom_call.1} parent=11 // pred_region
          _
        $region16: #{tpu_custom_call.1} parent=11 // pred_fallthru
          _
        // Predicated region
        $region17: #{tpu_custom_call.1} parent=11 // pred_check
          %p184 = pneg %p96
        $region18: #{tpu_custom_call.1} parent=11 // pred_check_branch
          %186 = sbr.rel (%p184) target = $region20
        $region19: #{tpu_custom_call.1} parent=11 // pred_region
          _
        $region20: #{tpu_custom_call.1} parent=11 // pred_fallthru
          _
        // Predicated region
        $region21: #{tpu_custom_call.1} parent=11 // pred_check
          %p187 = pneg %p117
        $region22: #{tpu_custom_call.1} parent=11 // pred_check_branch
          %189 = sbr.rel (%p187) target = $region24
        $region23: #{tpu_custom_call.1} parent=11 // pred_region
          _
        $region24: #{tpu_custom_call.1} parent=11 // pred_fallthru
          _
        // Predicated region
        $region25: #{tpu_custom_call.1} parent=11 // pred_check
          %p190 = pneg %p138
        $region26: #{tpu_custom_call.1} parent=11 // pred_check_branch
          %192 = sbr.rel (%p190) target = $region28
        $region27: #{tpu_custom_call.1} parent=11 // pred_region
          _
        $region28: #{tpu_custom_call.1} parent=11 // pred_fallthru
          _
      $region12: #{tpu_custom_call.1} parent=5 // pred_fallthru
        _
      %p193 = scmp.lt.s32.totalorder %s14, 2
      // Predicated region
      $region29: #{tpu_custom_call.1} parent=5 // pred_check
        %p194 = pneg %p193
      $region30: #{tpu_custom_call.1} parent=5 // pred_check_branch
        %196 = sbr.rel (%p194) target = $region32
      $region31: #{tpu_custom_call.1} parent=5 // pred_region
        // Predicated region
        $region33: #{tpu_custom_call.1} parent=31 // pred_check
          %p197 = pneg %p48
        $region34: #{tpu_custom_call.1} parent=31 // pred_check_branch
          %199 = sbr.rel (%p197) target = $region36
        $region35: #{tpu_custom_call.1} parent=31 // pred_region
          %s200 = smul.u32 2, %s22
          %p201 = scmp.lt.s32.totalorder %s21, 1
          %s202 = scalar_select %p201, %s21, 1
          %p203 = scmp.lt.s32.totalorder %s200, 1
          %s204 = scalar_select %p203, %s200, 1
          %s205 = smul.addr %s202, 2
          %s206 = sadd.s32 %s204, %s205
          %s207 = smul.addr %s206, 4
          %s208 = scalar_lea.vmem %s0, %s207
          %s209 = smul.u32 2, %s22
        $region36: #{tpu_custom_call.1} parent=31 // pred_fallthru
          _
      $region32: #{tpu_custom_call.1} parent=5 // pred_fallthru
        _
      %p210 = scmp.le.s32.totalorder 1, %s14
      %p211 = scmp.lt.s32.totalorder %s14, 3
      %p212 = pnand %p210, %p211
      %p213 = pneg %p212
      // Predicated region
      $region37: #{tpu_custom_call.1} parent=5 // pred_check
        _
      $region38: #{tpu_custom_call.1} parent=5 // pred_check_branch
        %215 = sbr.rel (%p212) target = $region40
      $region39: #{tpu_custom_call.1} parent=5 // pred_region
        %s216 = ssub.s32 %s14, 1
        %s217 = smul.u32 2, %s24
        %p218 = scmp.lt.s32.totalorder %s23, 1
        %s219 = scalar_select %p218, %s23, 1
        %p220 = scmp.lt.s32.totalorder %s217, 1
        %s221 = scalar_select %p220, %s217, 1
        %s222 = smul.addr %s219, 2
        %s223 = sadd.s32 %s221, %s222
        %s224 = smul.addr %s223, 4
        %s225 = scalar_lea.vmem %s0, %s224
        %p226 = pneg %p54
        %p227 = pneg %p51
        %p228 = pneg %p75
        %p229 = pneg %p72
        %p230 = pneg %p96
        %p231 = pneg %p93
        %p232 = pneg %p117
        %p233 = pneg %p114
        %p234 = pneg %p138
        %p235 = pneg %p135
        %p236 = pneg %p166
        %p237 = pneg %p163
        %s238 = sand.u32 %s153, 1
        %s239 = scalar_lea.sflag [#allocation3], %s238
        %s240 = sand.u32 %s153, 1
        %s241 = smul.addr %s240, 128
        %s242 = scalar_lea.vmem [#allocation2], %s241
        %s243 = smul.u32 2, %s24
        %p244 = scmp.lt.s32.totalorder %s23, 1
        %s245 = scalar_select %p244, %s23, 1
        %p246 = scmp.lt.s32.totalorder %s243, 1
        %s247 = scalar_select %p246, %s243, 1
        %s248 = smul.addr %s245, 2
        %s249 = sadd.s32 %s247, %s248
        %s250 = smul.addr %s249, 4
        %s251 = scalar_lea.vmem %s0, %s250
        %s252 = smul.u32 2, %s24
        %s253 = smul.u32 2, %s24
        %v254 = vld [vmem:[%s251] sm:$0x77]
        %v255 = vld [vmem:[%s1] sm:$0xff]
        %v256 = vld [vmem:[%s1 + $0x8] sm:$0xff]
        %v257 = vld [vmem:[%s1 + $0x10] sm:$0xff]
        %v258 = vld [vmem:[%s1 + $0x18] sm:$0xff]
        %v259 = vld [vmem:[%s2] sm:$0xff]
        %v260 = vld [vmem:[%s2 + $0x8] sm:$0xff]
        %v261 = vld [vmem:[%s2 + $0x10] sm:$0xff]
        %v262 = vld [vmem:[%s2 + $0x18] sm:$0xff]
        %264 = vset.pattern.permute.xlu0 0
        %265 = vperm.xlu0 %264, %v259
        %v266 = vpop.permute.xlu0 %265
        %269 = vset.pattern.permute.xlu0 0
        %270 = vperm.xlu0 %269, %v260
        %v271 = vpop.permute.xlu0 %270
        %274 = vset.pattern.permute.xlu0 0
        %275 = vperm.xlu0 %274, %v261
        %v276 = vpop.permute.xlu0 %275
        %279 = vset.pattern.permute.xlu0 0
        %280 = vperm.xlu0 %279, %v262
        %v281 = vpop.permute.xlu0 %280
        %v284 = vcombine.high %v254, %v254
        %vm285 = vcmask 23552
        %v287 = vsel %vm285, %v255, 0
        %v290 = vsel %vm285, %v256, 0
        %v293 = vsel %vm285, %v257, 0
        %v296 = vsel %vm285, %v258, 0
        %vm298 = vcmask 1042432
        %v299 = vsel %vm298, %v254, 0
        %v301 = vsel %vm298, %v284, 0
        %303 = vmatprep.subr.mxu0 %v301
        %304 = vmatpush1.msra.mxu0 %v299
        %305 = vmatprep.subr.mxu0 0.0
        %306 = vmatpush1.msra.mxu0 0.0
        %307 = vmatprep.subr.mxu0 0.0
        %308 = vmatpush1.msra.mxu0 0.0
        %309 = vmatprep.subr.mxu0 0.0
        %310 = vmatpush1.msra.mxu0 0.0
        %311 = vmatprep.subr.mxu0 0.0
        %312 = vmatpush1.msra.mxu0 0.0
        %313 = vmatprep.subr.mxu0 0.0
        %314 = vmatpush1.msra.mxu0 0.0
        %315 = vmatprep.subr.mxu0 0.0
        %316 = vmatpush1.msra.mxu0 0.0
        %317 = vmatprep.subr.mxu0 0.0
        %318 = vmatpush1.msra.mxu0 0.0
        %319 = vmatprep.subr.mxu0 0.0
        %320 = vmatpush1.msra.mxu0 0.0
        %321 = vmatprep.subr.mxu0 0.0
        %322 = vmatpush1.msra.mxu0 0.0
        %323 = vmatprep.subr.mxu0 0.0
        %324 = vmatpush1.msra.mxu0 0.0
        %325 = vmatprep.subr.mxu0 0.0
        %326 = vmatpush1.msra.mxu0 0.0
        %327 = vmatprep.subr.mxu0 0.0
        %328 = vmatpush1.msra.mxu0 0.0
        %329 = vmatprep.subr.mxu0 0.0
        %330 = vmatpush1.msra.mxu0 0.0
        %331 = vmatprep.subr.mxu0 0.0
        %332 = vmatpush1.msra.mxu0 0.0
        %333 = vmatprep.subr.mxu0 0.0
        %334 = vmatpush1.msra.mxu0 0.0
        %335 = vmatprep.subr.mxu0 0.0
        %336 = vmatpush1.msra.mxu0 0.0
        %337 = vmatprep.subr.mxu0 0.0
        %338 = vmatpush1.msra.mxu0 0.0
        %339 = vmatprep.subr.mxu0 0.0
        %340 = vmatpush1.msra.mxu0 0.0
        %341 = vmatprep.subr.mxu0 0.0
        %342 = vmatpush1.msra.mxu0 0.0
        %343 = vmatprep.subr.mxu0 0.0
        %344 = vmatpush1.msra.mxu0 0.0
        %345 = vmatprep.subr.mxu0 0.0
        %346 = vmatpush1.msra.mxu0 0.0
        %347 = vmatprep.subr.mxu0 0.0
        %348 = vmatpush1.msra.mxu0 0.0
        %349 = vmatprep.subr.mxu0 0.0
        %350 = vmatpush1.msra.mxu0 0.0
        %351 = vmatprep.subr.mxu0 0.0
        %352 = vmatpush1.msra.mxu0 0.0
        %353 = vmatprep.subr.mxu0 0.0
        %354 = vmatpush1.msra.mxu0 0.0
        %355 = vmatprep.subr.mxu0 0.0
        %356 = vmatpush1.msra.mxu0 0.0
        %357 = vmatprep.subr.mxu0 0.0
        %358 = vmatpush1.msra.mxu0 0.0
        %359 = vmatprep.subr.mxu0 0.0
        %360 = vmatpush1.msra.mxu0 0.0
        %361 = vmatprep.subr.mxu0 0.0
        %362 = vmatpush1.msra.mxu0 0.0
        %363 = vmatprep.subr.mxu0 0.0
        %364 = vmatpush1.msra.mxu0 0.0
        %365 = vmatprep.subr.mxu0 0.0
        %366 = vmatpush1.msra.mxu0 0.0
        %367 = vmatprep.mubr.f32.mxu0 0.0
        %368 = vmatmul.mubr.f32.gmra.mrb[0].mxu0 %v287
        %v369 = vpop.f32.mrb[0].mxu0
        %v370 = vadd.f32 %v266, %v369
        %v371 = vpop.f32.mrb[0].mxu0
        %v372 = vadd.f32 %v266, %v371
        %373 = vmatprep.mubr.f32.mxu0 0.0
        %374 = vmatmul.mubr.f32.gmra.mrb[0].mxu0 %v290
        %v375 = vpop.f32.mrb[0].mxu0
        %v376 = vadd.f32 %v271, %v375
        %v377 = vpop.f32.mrb[0].mxu0
        %v378 = vadd.f32 %v271, %v377
        %379 = vmatprep.mubr.f32.mxu0 0.0
        %380 = vmatmul.mubr.f32.gmra.mrb[0].mxu0 %v293
        %v381 = vpop.f32.mrb[0].mxu0
        %v382 = vadd.f32 %v276, %v381
        %v383 = vpop.f32.mrb[0].mxu0
        %v384 = vadd.f32 %v276, %v383
        %385 = vmatprep.mubr.f32.mxu0 0.0
        %386 = vmatmul.mubr.f32.gmra.mrb[0].mxu0 %v296
        %v387 = vpop.f32.mrb[0].mxu0
        %v388 = vadd.f32 %v281, %v387
        %v389 = vpop.f32.mrb[0].mxu0
        %v390 = vadd.f32 %v281, %v389
        %391 = vdwg.mxu0
        %v392 = vmax.f32 %v370, 0.0
        %v393 = vmax.f32 %v372, 0.0
        %v394 = vmax.f32 %v376, 0.0
        %v395 = vmax.f32 %v378, 0.0
        %v396 = vmax.f32 %v382, 0.0
        %v397 = vmax.f32 %v384, 0.0
        %v398 = vmax.f32 %v388, 0.0
        %v399 = vmax.f32 %v390, 0.0
        %v400 = vld [vmem:[%s3] sm:$0xff]
        %v401 = vld [vmem:[%s3 + $0x8] sm:$0xff]
        %v402 = vld [vmem:[%s3 + $0x10] sm:$0xff]
        %v403 = vld [vmem:[%s3 + $0x18] sm:$0xff]
        %v404 = vld [vmem:[%s3 + $0x20] sm:$0xff]
        %v405 = vld [vmem:[%s3 + $0x28] sm:$0xff]
        %v406 = vld [vmem:[%s3 + $0x30] sm:$0xff]
        %v407 = vld [vmem:[%s3 + $0x38] sm:$0xff]
        %v408 = vld [vmem:[%s4] sm:$0xff]
        %v409 = vld [vmem:[%s4 + $0x8] sm:$0xff]
        %v410 = vld [vmem:[%s4 + $0x10] sm:$0xff]
        %v411 = vld [vmem:[%s4 + $0x18] sm:$0xff]
        %v412 = vld [vmem:[%s4 + $0x20] sm:$0xff]
        %v413 = vld [vmem:[%s4 + $0x28] sm:$0xff]
        %v414 = vld [vmem:[%s4 + $0x30] sm:$0xff]
        %v415 = vld [vmem:[%s4 + $0x38] sm:$0xff]
        %417 = vset.pattern.permute.xlu0 0
        %418 = vperm.xlu0 %417, %v408
        %v419 = vpop.permute.xlu0 %418
        %422 = vset.pattern.permute.xlu0 0
        %423 = vperm.xlu0 %422, %v409
        %v424 = vpop.permute.xlu0 %423
        %427 = vset.pattern.permute.xlu0 0
        %428 = vperm.xlu0 %427, %v410
        %v429 = vpop.permute.xlu0 %428
        %432 = vset.pattern.permute.xlu0 0
        %433 = vperm.xlu0 %432, %v411
        %v434 = vpop.permute.xlu0 %433
        %437 = vset.pattern.permute.xlu0 0
        %438 = vperm.xlu0 %437, %v412
        %v439 = vpop.permute.xlu0 %438
        %442 = vset.pattern.permute.xlu0 0
        %443 = vperm.xlu0 %442, %v413
        %v444 = vpop.permute.xlu0 %443
        %447 = vset.pattern.permute.xlu0 0
        %448 = vperm.xlu0 %447, %v414
        %v449 = vpop.permute.xlu0 %448
        %452 = vset.pattern.permute.xlu0 0
        %453 = vperm.xlu0 %452, %v415
        %v454 = vpop.permute.xlu0 %453
        %vm456 = vcmask 261120
        %v458 = vsel %vm456, %v400, 0
        %v461 = vsel %vm456, %v401, 0
        %v464 = vsel %vm456, %v402, 0
        %v467 = vsel %vm456, %v403, 0
        %v470 = vsel %vm456, %v404, 0
        %v473 = vsel %vm456, %v405, 0
        %v476 = vsel %vm456, %v406, 0
        %v479 = vsel %vm456, %v407, 0
        %481 = vmatprep.subr.mxu0 %v393
        %482 = vmatpush1.msra.mxu0 %v392
        %483 = vmatprep.subr.mxu0 %v395
        %484 = vmatpush1.msra.mxu0 %v394
        %485 = vmatprep.subr.mxu0 %v397
        %486 = vmatpush1.msra.mxu0 %v396
        %487 = vmatprep.subr.mxu0 %v399
        %488 = vmatpush1.msra.mxu0 %v398
        %489 = vmatprep.subr.mxu0 0.0
        %490 = vmatpush1.msra.mxu0 0.0
        %491 = vmatprep.subr.mxu0 0.0
        %492 = vmatpush1.msra.mxu0 0.0
        %493 = vmatprep.subr.mxu0 0.0
        %494 = vmatpush1.msra.mxu0 0.0
        %495 = vmatprep.subr.mxu0 0.0
        %496 = vmatpush1.msra.mxu0 0.0
        %497 = vmatprep.subr.mxu0 0.0
        %498 = vmatpush1.msra.mxu0 0.0
        %499 = vmatprep.subr.mxu0 0.0
        %500 = vmatpush1.msra.mxu0 0.0
        %501 = vmatprep.subr.mxu0 0.0
        %502 = vmatpush1.msra.mxu0 0.0
        %503 = vmatprep.subr.mxu0 0.0
        %504 = vmatpush1.msra.mxu0 0.0
        %505 = vmatprep.subr.mxu0 0.0
        %506 = vmatpush1.msra.mxu0 0.0
        %507 = vmatprep.subr.mxu0 0.0
        %508 = vmatpush1.msra.mxu0 0.0
        %509 = vmatprep.subr.mxu0 0.0
        %510 = vmatpush1.msra.mxu0 0.0
        %511 = vmatprep.subr.mxu0 0.0
        %512 = vmatpush1.msra.mxu0 0.0
        %513 = vmatprep.subr.mxu0 0.0
        %514 = vmatpush1.msra.mxu0 0.0
        %515 = vmatprep.subr.mxu0 0.0
        %516 = vmatpush1.msra.mxu0 0.0
        %517 = vmatprep.subr.mxu0 0.0
        %518 = vmatpush1.msra.mxu0 0.0
        %519 = vmatprep.subr.mxu0 0.0
        %520 = vmatpush1.msra.mxu0 0.0
        %521 = vmatprep.subr.mxu0 0.0
        %522 = vmatpush1.msra.mxu0 0.0
        %523 = vmatprep.subr.mxu0 0.0
        %524 = vmatpush1.msra.mxu0 0.0
        %525 = vmatprep.subr.mxu0 0.0
        %526 = vmatpush1.msra.mxu0 0.0
        %527 = vmatprep.subr.mxu0 0.0
        %528 = vmatpush1.msra.mxu0 0.0
        %529 = vmatprep.subr.mxu0 0.0
        %530 = vmatpush1.msra.mxu0 0.0
        %531 = vmatprep.subr.mxu0 0.0
        %532 = vmatpush1.msra.mxu0 0.0
        %533 = vmatprep.subr.mxu0 0.0
        %534 = vmatpush1.msra.mxu0 0.0
        %535 = vmatprep.subr.mxu0 0.0
        %536 = vmatpush1.msra.mxu0 0.0
        %537 = vmatprep.subr.mxu0 0.0
        %538 = vmatpush1.msra.mxu0 0.0
        %539 = vmatprep.subr.mxu0 0.0
        %540 = vmatpush1.msra.mxu0 0.0
        %541 = vmatprep.subr.mxu0 0.0
        %542 = vmatpush1.msra.mxu0 0.0
        %543 = vmatprep.subr.mxu0 0.0
        %544 = vmatpush1.msra.mxu0 0.0
        %545 = vmatprep.mubr.f32.mxu0 0.0
        %546 = vmatmul.mubr.f32.gmra.mrb[0].mxu0 %v458
        %v547 = vpop.f32.mrb[0].mxu0
        %v548 = vadd.f32 %v419, %v547
        %v549 = vpop.f32.mrb[0].mxu0
        %v550 = vadd.f32 %v419, %v549
        %551 = vmatprep.mubr.f32.mxu0 0.0
        %552 = vmatmul.mubr.f32.gmra.mrb[0].mxu0 %v461
        %v553 = vpop.f32.mrb[0].mxu0
        %v554 = vadd.f32 %v424, %v553
        %v555 = vpop.f32.mrb[0].mxu0
        %v556 = vadd.f32 %v424, %v555
        %557 = vmatprep.mubr.f32.mxu0 0.0
        %558 = vmatmul.mubr.f32.gmra.mrb[0].mxu0 %v464
        %v559 = vpop.f32.mrb[0].mxu0
        %v560 = vadd.f32 %v429, %v559
        %v561 = vpop.f32.mrb[0].mxu0
        %v562 = vadd.f32 %v429, %v561
        %563 = vmatprep.mubr.f32.mxu0 0.0
        %564 = vmatmul.mubr.f32.gmra.mrb[0].mxu0 %v467
        %v565 = vpop.f32.mrb[0].mxu0
        %v566 = vadd.f32 %v434, %v565
        %v567 = vpop.f32.mrb[0].mxu0
        %v568 = vadd.f32 %v434, %v567
        %569 = vmatprep.mubr.f32.mxu0 0.0
        %570 = vmatmul.mubr.f32.gmra.mrb[0].mxu0 %v470
        %v571 = vpop.f32.mrb[0].mxu0
        %v572 = vadd.f32 %v439, %v571
        %v573 = vpop.f32.mrb[0].mxu0
        %v574 = vadd.f32 %v439, %v573
        %575 = vmatprep.mubr.f32.mxu0 0.0
        %576 = vmatmul.mubr.f32.gmra.mrb[0].mxu0 %v473
        %v577 = vpop.f32.mrb[0].mxu0
        %v578 = vadd.f32 %v444, %v577
        %v579 = vpop.f32.mrb[0].mxu0
        %v580 = vadd.f32 %v444, %v579
        %581 = vmatprep.mubr.f32.mxu0 0.0
        %582 = vmatmul.mubr.f32.gmra.mrb[0].mxu0 %v476
        %v583 = vpop.f32.mrb[0].mxu0
        %v584 = vadd.f32 %v449, %v583
        %v585 = vpop.f32.mrb[0].mxu0
        %v586 = vadd.f32 %v449, %v585
        %587 = vmatprep.mubr.f32.mxu0 0.0
        %588 = vmatmul.mubr.f32.gmra.mrb[0].mxu0 %v479
        %v589 = vpop.f32.mrb[0].mxu0
        %v590 = vadd.f32 %v454, %v589
        %v591 = vpop.f32.mrb[0].mxu0
        %v592 = vadd.f32 %v454, %v591
        %593 = vdwg.mxu0
        %594 = vst [vmem:[%s242] sm:$0xff] %v548
        %595 = vst [vmem:[%s242 + $0x8] sm:$0xff] %v550
        %596 = vst [vmem:[%s242 + $0x10] sm:$0xff] %v554
        %597 = vst [vmem:[%s242 + $0x18] sm:$0xff] %v556
        %598 = vst [vmem:[%s242 + $0x20] sm:$0xff] %v560
        %599 = vst [vmem:[%s242 + $0x28] sm:$0xff] %v562
        %600 = vst [vmem:[%s242 + $0x30] sm:$0xff] %v566
        %601 = vst [vmem:[%s242 + $0x38] sm:$0xff] %v568
        %602 = vst [vmem:[%s242 + $0x40] sm:$0xff] %v572
        %603 = vst [vmem:[%s242 + $0x48] sm:$0xff] %v574
        %604 = vst [vmem:[%s242 + $0x50] sm:$0xff] %v578
        %605 = vst [vmem:[%s242 + $0x58] sm:$0xff] %v580
        %606 = vst [vmem:[%s242 + $0x60] sm:$0xff] %v584
        %607 = vst [vmem:[%s242 + $0x68] sm:$0xff] %v586
        %608 = vst [vmem:[%s242 + $0x70] sm:$0xff] %v590
        %609 = vst [vmem:[%s242 + $0x78] sm:$0xff] %v592
        %s610 = sand.u32 %s153, 1
        %s611 = scalar_lea.sflag [#allocation3], %s610
        %s612 = sand.u32 %s153, 1
        %s613 = smul.addr %s612, 128
        %s614 = scalar_lea.vmem [#allocation2], %s613
        // Predicated region
        $region41: #{tpu_custom_call.1} parent=39 // pred_check
          %p615 = pneg %p163
        $region42: #{tpu_custom_call.1} parent=39 // pred_check_branch
          %617 = sbr.rel (%p615) target = $region44
        $region43: #{tpu_custom_call.1} parent=39 // pred_region
          %s618 = smul.u32 2, %s24
          %s620 = ssub.s32 2048, 2048
          %621 = vsyncadd %s611, %s620
          %s622 = smul.addr %s23, 16
          %s623 = sadd.s32 %s618, %s622
          %s624 = smul.addr %s623, 128
          %s625 = scalar_lea.hbm %s5, %s624
          %s626 = sshll.u32 %s614, 4
          %s627 = int_to_ptr.vmem [resolvable:$true] %s626
          %632 = dma.vmem_to_hbm [thread:$0]  %s627, 2048, %s625, %s611, 256, 256, 16
        $region44: #{tpu_custom_call.1} parent=39 // pred_fallthru
          _
      $region40: #{tpu_custom_call.1} parent=5 // pred_fallthru
        _
      %p633 = scmp.le.s32.totalorder 2, %s14
      // Predicated region
      $region45: #{tpu_custom_call.1} parent=5 // pred_check
        %p634 = pneg %p633
      $region46: #{tpu_custom_call.1} parent=5 // pred_check_branch
        %636 = sbr.rel (%p634) target = $region48
      $region47: #{tpu_custom_call.1} parent=5 // pred_region
        %s637 = ssub.s32 %s14, 2
        // Predicated region
        $region49: #{tpu_custom_call.1} parent=47 // pred_check
          %p638 = pneg %p169
        $region50: #{tpu_custom_call.1} parent=47 // pred_check_branch
          %640 = sbr.rel (%p638) target = $region52
        $region51: #{tpu_custom_call.1} parent=47 // pred_region
          %s641 = sand.u32 %s154, 1
          %s642 = scalar_lea.sflag [#allocation3], %s641
          %s643 = sand.u32 %s154, 1
          %s644 = smul.addr %s643, 128
          %s645 = scalar_lea.vmem [#allocation2], %s644
          %646 = dma.done %s642, 2048
        $region52: #{tpu_custom_call.1} parent=47 // pred_fallthru
          _
      $region48: #{tpu_custom_call.1} parent=5 // pred_fallthru
        _
    $region6: #{tpu_custom_call.1} parent=1 // loop_footer
      %s18 = sadd.s32 1, %s14
    $region7: #{tpu_custom_call.1} parent=1 // loop_footer_branch
      %13 = sbr.rel target = $region3
    $region8: #{tpu_custom_call.1} parent=1 // loop_exit
      _
    %647 = vsyncpa [#allocation3], 1
    %s648 = scalar_lea.sflag [#allocation3], 1
    %649 = vsyncpa %s648, 1

</llo_original>
